<compile_context>
chip_gen: v5e
topology: v5e:2x2
jax: 0.10.0
libtpu: 0.0.40
codegen_flags: <defaults>
</compile_context>

<pallas_src>
import jax
import jax.numpy as jnp
from jax.experimental import pallas as pl
from jax.experimental.pallas import tpu as pltpu
import numpy as np

DILATION = 4
BN_EPS = 1e-5


def _round_up(v, m):
    return (v + m - 1) // m * m


def make_kernel(bl_valid, blpad):
    """bl_valid = B*L (true reduction count), blpad = lane-padded B*L."""

    def kernel(xs_ref, w_ref, gb_ref, o_ref):
        # xs_ref: [Kpad, BLpad]  bf16  shared im2col stack (zero-padded cols)
        # w_ref : [TO, Kpad]     bf16  packed conv weights for this channel tile
        # gb_ref: [TO, 2]        f32   (gamma | beta)
        # o_ref : [TO, BLpad]    f32
        y = jnp.dot(w_ref[...], xs_ref[...],
                    preferred_element_type=jnp.float32)          # [TO, BLpad]

        inv_n = 1.0 / float(bl_valid)
        # Padded lane columns of Xs are zero, so y there is exactly zero and
        # the plain lane sum already equals the sum over the valid B*L columns.
        mean = jnp.sum(y, axis=-1, keepdims=True) * inv_n         # [TO, 1]

        # Mask padded lanes for the (numerically safer) two-pass variance.
        lane = jax.lax.broadcasted_iota(jnp.int32, (1, blpad), 1)
        mask = (lane < bl_valid).astype(jnp.float32)              # [1, BLpad]
        d = (y - mean) * mask
        var = jnp.sum(d * d, axis=-1, keepdims=True) * inv_n      # [TO, 1]

        scale = gb_ref[:, 0:1] * jax.lax.rsqrt(var + BN_EPS)      # [TO, 1]
        shift = gb_ref[:, 1:2] - mean * scale                     # [TO, 1]

        # Fused BN + ReLU, full-tile (unmasked, lane-dense) store.
        o_ref[...] = jnp.maximum(y * scale + shift, 0.0)

    return kernel


def build_layer_pallas(x, branch_params):
    """x: [B, C_in, L] float32.
    branch_params: list of (conv_w [O,C,k], conv_b [O], bn_gamma [O], bn_beta [O]).
    Returns relu(concat_i(BN_i(Conv1d_i(x)), dim=1)) with shape [B, sum(O_i), L]."""
    B, C, L = x.shape
    ksizes = [int(w.shape[2]) for (w, _, _, _) in branch_params]
    lefts = [(DILATION * (k - 1)) // 2 for k in ksizes]   # PyTorch 'same' left pad
    pad_max = max(lefts)

    # Union of tap offsets (relative to the globally padded input) across branches.
    offsets = sorted({(pad_max - lf) + DILATION * j
                      for k, lf in zip(ksizes, lefts) for j in range(k)})
    off_index = {o: i for i, o in enumerate(offsets)}
    n_off = len(offsets)

    K = n_off * C
    BL = B * L
    Kpad = _round_up(K, 8)
    BLpad = _round_up(BL, 128)

    # ---------------- im2col stack (wrapper-side layout plumbing) -------------
    x_pad = jnp.pad(x.astype(jnp.float32), ((0, 0), (0, 0), (pad_max, pad_max)))
    Xs = jnp.stack([x_pad[:, :, o:o + L] for o in offsets], axis=0)  # [n_off,B,C,L]
    Xs = jnp.transpose(Xs, (0, 2, 1, 3)).reshape(K, BL)              # [K, B*L]
    Xs = jnp.pad(Xs, ((0, Kpad - K), (0, BLpad - BL))).astype(jnp.bfloat16)

    # ---- pack ALL branch conv weights into one [O_total, K] matrix -----------
    # Conv bias is intentionally dropped: training-mode BatchNorm mean
    # subtraction cancels it exactly.
    w_rows, gammas, betas = [], [], []
    for (w, _b, g, be) in branch_params:
        O, Cw, k = w.shape
        assert Cw == C
        base = pad_max - (DILATION * (k - 1)) // 2
        blocks = [jnp.zeros((O, C), jnp.float32) for _ in range(n_off)]
        for j in range(k):
            blocks[off_index[base + DILATION * j]] = w[:, :, j].astype(jnp.float32)
        w_rows.append(jnp.concatenate(blocks, axis=1))               # [O, K]
        gammas.append(g.astype(jnp.float32))
        betas.append(be.astype(jnp.float32))
    W = jnp.concatenate(w_rows, axis=0)                              # [O_total, K]
    O_total = W.shape[0]

    # Output-channel tiling -> parallel grid axis (megacore on v7x).
    TO = min(_round_up(O_total, 8), 256)
    O_pad = _round_up(O_total, TO)
    W = jnp.pad(W, ((0, O_pad - O_total), (0, Kpad - K))).astype(jnp.bfloat16)
    gb = jnp.stack([jnp.concatenate(gammas), jnp.concatenate(betas)], axis=1)
    gb = jnp.pad(gb, ((0, O_pad - O_total), (0, 0))).astype(jnp.float32)

    kernel = make_kernel(BL, BLpad)
    out = pl.pallas_call(
        kernel,
        out_shape=jax.ShapeDtypeStruct((O_pad, BLpad), jnp.float32),
        grid_spec=pltpu.PrefetchScalarGridSpec(
            num_scalar_prefetch=0,
            grid=(O_pad // TO,),
            in_specs=[
                pl.BlockSpec((Kpad, BLpad), lambda i: (0, 0)),   # shared Xs
                pl.BlockSpec((TO, Kpad), lambda i: (i, 0)),      # weight tile
                pl.BlockSpec((TO, 2), lambda i: (i, 0)),         # gamma/beta tile
            ],
            out_specs=pl.BlockSpec((TO, BLpad), lambda i: (i, 0)),
        ),
        compiler_params=pltpu.CompilerParams(
            dimension_semantics=("parallel",),
            vmem_limit_bytes=32 * 1024 * 1024,
        ),
    )(Xs, W, gb)

    # Un-plumb the lane-dense slab: [O_pad, BLpad] -> [B, O_total, L].
    out = out[:O_total, :BL].reshape(O_total, B, L)
    return jnp.transpose(out, (1, 0, 2))


# ----------------------------- pure-JAX reference --------------------------- #
def reference_forward(x, branch_params):
    B, C, L = x.shape
    outs = []
    for (w, b, g, be) in branch_params:
        O, _, k = w.shape
        left = (DILATION * (k - 1)) // 2
        right = DILATION * (k - 1) - left
        xp = jnp.pad(x, ((0, 0), (0, 0), (left, right)))
        y = jnp.zeros((B, O, L), jnp.float32)
        for j in range(k):
            y = y + jnp.einsum('oc,bcl->bol', w[:, :, j],
                               xp[:, :, j * DILATION: j * DILATION + L],
                               precision=jax.lax.Precision.HIGHEST)
        y = y + b[None, :, None]
        mean = jnp.mean(y, axis=(0, 2), keepdims=True)
        var = jnp.mean((y - mean) ** 2, axis=(0, 2), keepdims=True)
        y = (y - mean) / jnp.sqrt(var + BN_EPS)
        y = y * g[None, :, None] + be[None, :, None]
        outs.append(y)
    return jax.nn.relu(jnp.concatenate(outs, axis=1))


# ----------------------------------- main ------------------------------------ #
if __name__ == "__main__":
    # Small shapes consistent with the module: x [batch=2, channels=4, length=16];
    # layer_parameters = [(in_ch, out_ch, kernel_size), ...] as in the PyTorch ctor.
    B, C_in, L = 2, 4, 16
    layer_parameters = [(C_in, 8, 3), (C_in, 8, 5), (C_in, 8, 7)]

    key = jax.random.PRNGKey(0)
    branch_params = []
    for (cin, cout, ksz) in layer_parameters:
        key, k1, k2, k3, k4 = jax.random.split(key, 5)
        bound = 1.0 / np.sqrt(cin * ksz)   # PyTorch Conv1d default init range
        w = jax.random.uniform(k1, (cout, cin, ksz), jnp.float32, -bound, bound)
        b = jax.random.uniform(k2, (cout,), jnp.float32, -bound, bound)
        g = 1.0 + 0.1 * jax.random.normal(k3, (cout,), jnp.float32)   # BN weight
        be = 0.1 * jax.random.normal(k4, (cout,), jnp.float32)        # BN bias
        branch_params.append((w, b, g, be))

    key, kx = jax.random.split(key)
    x = jax.random.normal(kx, (B, C_in, L), jnp.float32)

    out = build_layer_pallas(x, branch_params)
    jax.block_until_ready(out)

    ref = reference_forward(x, branch_params)
    O_total = sum(p[1] for p in layer_parameters)
    assert out.shape == (B, O_total, L)
    # bf16 MXU operands with f32 accumulation; BN output is unit-scale.
    np.testing.assert_allclose(np.asarray(out), np.asarray(ref),
                               rtol=2e-2, atol=2e-2)
    print("KERNEL_OK")
</pallas_src>

<mosaic_0001>
module attributes {stable_mosaic.version = 11 : i64} {
  func.func @kernel(%arg0: i32, %arg1: memref<32x128xbf16, #tpu.memory_space<vmem>>, %arg2: memref<24x32xbf16, #tpu.memory_space<vmem>>, %arg3: memref<24x2xf32, #tpu.memory_space<vmem>>, %arg4: memref<24x128xf32, #tpu.memory_space<vmem>>) attributes {dimension_semantics = [#tpu.dimension_semantics<parallel>], iteration_bounds = array<i64: 1>, scalar_prefetch = 0 : i64, scratch_operands = 0 : i64, tpu.core_type = #tpu.core_type<tc>, window_params = [{pipeline_mode = #tpu.pipeline_mode<synchronous>, transform_indices = @transform_0, window_bounds = array<i64: 32, 128>}, {transform_indices = @transform_1, window_bounds = array<i64: 24, 32>}, {transform_indices = @transform_2, window_bounds = array<i64: 24, 2>}, {transform_indices = @transform_3, window_bounds = array<i64: 24, 128>}]} {
    %c0 = arith.constant 0 : index
    %c0_0 = arith.constant 0 : index
    %0 = vector.load %arg2[%c0, %c0_0] : memref<24x32xbf16, #tpu.memory_space<vmem>>, vector<24x32xbf16>
    %c0_1 = arith.constant 0 : index
    %c0_2 = arith.constant 0 : index
    %1 = vector.load %arg1[%c0_1, %c0_2] : memref<32x128xbf16, #tpu.memory_space<vmem>>, vector<32x128xbf16>
    %cst = arith.constant dense<0.000000e+00> : vector<24x128xf32>
    %2 = tpu.matmul %0, %1, %cst {dimension_numbers = #tpu.dot_dimension_numbers<[1], [0], [0], [1], [0, 0, 1, 1], [], []>} : vector<24x32xbf16>, vector<32x128xbf16>, vector<24x128xf32> -> vector<24x128xf32>
    %cst_3 = arith.constant dense<0.000000e+00> : vector<24xf32>
    %3 = vector.multi_reduction <add>, %2, %cst_3 [1] : vector<24x128xf32> to vector<24xf32>
    %4 = vector.shape_cast %3 : vector<24xf32> to vector<24x1xf32>
    %cst_4 = arith.constant 3.125000e-02 : f32
    %5 = vector.broadcast %cst_4 : f32 to vector<24x1xf32>
    %6 = arith.mulf %4, %5 : vector<24x1xf32>
    %7 = tpu.iota {dimensions = array<i32: 1>} : vector<1x128xi32>
    %c32_i32 = arith.constant 32 : i32
    %8 = vector.broadcast %c32_i32 : i32 to vector<1x128xi32>
    %9 = arith.cmpi slt, %7, %8 : vector<1x128xi32>
    %10 = arith.extui %9 : vector<1x128xi1> to vector<1x128xi32>
    %11 = arith.sitofp %10 : vector<1x128xi32> to vector<1x128xf32>
    %12 = vector.broadcast %6 : vector<24x1xf32> to vector<24x128xf32>
    %13 = arith.subf %2, %12 : vector<24x128xf32>
    %14 = vector.broadcast %11 : vector<1x128xf32> to vector<24x128xf32>
    %15 = arith.mulf %13, %14 : vector<24x128xf32>
    %16 = arith.mulf %15, %15 : vector<24x128xf32>
    %cst_5 = arith.constant dense<0.000000e+00> : vector<24xf32>
    %17 = vector.multi_reduction <add>, %16, %cst_5 [1] : vector<24x128xf32> to vector<24xf32>
    %18 = vector.shape_cast %17 : vector<24xf32> to vector<24x1xf32>
    %cst_6 = arith.constant 3.125000e-02 : f32
    %19 = vector.broadcast %cst_6 : f32 to vector<24x1xf32>
    %20 = arith.mulf %18, %19 : vector<24x1xf32>
    %c0_7 = arith.constant 0 : index
    %c0_8 = arith.constant 0 : index
    %21 = vector.load %arg3[%c0_7, %c0_8] : memref<24x2xf32, #tpu.memory_space<vmem>>, vector<24x1xf32>
    %cst_9 = arith.constant 9.99999974E-6 : f32
    %22 = vector.broadcast %cst_9 : f32 to vector<24x1xf32>
    %23 = arith.addf %20, %22 : vector<24x1xf32>
    %24 = math.rsqrt %23 : vector<24x1xf32>
    %25 = arith.mulf %21, %24 : vector<24x1xf32>
    %c0_10 = arith.constant 0 : index
    %c1 = arith.constant 1 : index
    %26 = vector.load %arg3[%c0_10, %c1] : memref<24x2xf32, #tpu.memory_space<vmem>>, vector<24x1xf32>
    %27 = arith.mulf %6, %25 : vector<24x1xf32>
    %28 = arith.subf %26, %27 : vector<24x1xf32>
    %29 = vector.broadcast %25 : vector<24x1xf32> to vector<24x128xf32>
    %30 = arith.mulf %2, %29 : vector<24x128xf32>
    %31 = vector.broadcast %28 : vector<24x1xf32> to vector<24x128xf32>
    %32 = arith.addf %30, %31 : vector<24x128xf32>
    %cst_11 = arith.constant 0.000000e+00 : f32
    %33 = vector.broadcast %cst_11 : f32 to vector<24x128xf32>
    %34 = arith.maximumf %32, %33 : vector<24x128xf32>
    %c0_12 = arith.constant 0 : index
    %c0_13 = arith.constant 0 : index
    %35 = vector.load %arg4[%c0_12, %c0_13] : memref<24x128xf32, #tpu.memory_space<vmem>>, vector<24x128xf32>
    tpu.vector_store %arg4[%c0_12, %c0_13], %34 {strides = array<i32>} : memref<24x128xf32, #tpu.memory_space<vmem>>, vector<24x128xf32>,
    return
  }
  func.func @transform_0(%arg0: i32) -> (i32, i32) {
    %c0_i32 = arith.constant 0 : i32
    %c0_i32_0 = arith.constant 0 : i32
    %c0_i32_1 = arith.constant 0 : i32
    return %c0_i32, %c0_i32_0 : i32, i32
  }
  func.func @transform_1(%arg0: i32) -> (i32, i32) {
    %c0_i32 = arith.constant 0 : i32
    %c0_i32_0 = arith.constant 0 : i32
    return %arg0, %c0_i32 : i32, i32
  }
  func.func @transform_2(%arg0: i32) -> (i32, i32) {
    %c0_i32 = arith.constant 0 : i32
    %c0_i32_0 = arith.constant 0 : i32
    return %arg0, %c0_i32 : i32, i32
  }
  func.func @transform_3(%arg0: i32) -> (i32, i32) {
    %c0_i32 = arith.constant 0 : i32
    %c0_i32_0 = arith.constant 0 : i32
    return %arg0, %c0_i32 : i32, i32
  }
}

</mosaic_0001>

<llo_original>
// kernel: tpu_custom_call.1
$region0: #{tpu_custom_call.1}
  #allocation0 [shape = 'u32[]', space=smem, size = 0x4, offset = 0x4, fixed_abs, tag = 'smem constant byte address 0x4 - core index']
  #allocation1 [shape = 'u32[72,128]{1,0:T(1,128)}', space=vmem, size = 0x9000, scoped, tag = 'internal scratch']
  %s0 = inlined_call_operand.vmem [shape: bf16[32,128], index: 0, kind: input, shape index: {}]
  %s1 = inlined_call_operand.hbm [shape: bf16[24,32], index: 1, kind: input, shape index: {}]
  %s2 = inlined_call_operand.vmem [shape: f32[24,2], index: 2, kind: input, shape index: {}]
  %s3 = inlined_call_operand.hbm [shape: f32[24,128], index: 3, kind: output, shape index: {}]
  %s4 = sld [smem:[#allocation0]]
  $region26: #{tpu_custom_call.1} parent=0
    _
  %s6 = ssub.s32 1, %s4
  %s7 = scalar_select 0, %s6, %s4
  $region1: #{tpu_custom_call.1} parent=0
    #allocation2 [shape = 'u8[6144]{0}', space=vmem, size = 0x1800, scoped, tag = 'input window, operand 1, single buffered']
    #allocation3 [shape = 's32[1]{0}', space=sflag, size = 0x4, scoped, tag = 'scoped memory for tpu_custom_call.1']
    #allocation4 [shape = 's32[1]{0}', space=sflag, size = 0x4, scoped, tag = 'scoped memory for tpu_custom_call.1']
    #allocation5 [shape = 'u8[12288]{0}', space=vmem, size = 0x3000, scoped, tag = 'output window, operand 0, single buffered']
    %8 = vsyncpa [#allocation3], 0
    %9 = vsyncpa [#allocation4], 0
    // Predicated region
    $region2: #{tpu_custom_call.1} parent=1 // pred_check
      _
    $region3: #{tpu_custom_call.1} parent=1 // pred_check_branch
      %11 = sbr.rel (0) target = $region5
    $region4: #{tpu_custom_call.1} parent=1 // pred_region
      _
    $region5: #{tpu_custom_call.1} parent=1 // pred_fallthru
      _
    // Predicated region
    $region6: #{tpu_custom_call.1} parent=1 // pred_check
      _
    $region7: #{tpu_custom_call.1} parent=1 // pred_check_branch
      %13 = sbr.rel (0) target = $region9
    $region8: #{tpu_custom_call.1} parent=1 // pred_region
      %15 = vsyncadd [#allocation3], 0
      %s16 = sshll.u32 %s1, 4
      %s17 = int_to_ptr.hbm [resolvable:$true] %s16
      %s18 = sshll.u32 [#allocation2], 4
      %s19 = int_to_ptr.vmem [resolvable:$true] %s18
      %24 = dma.hbm_to_vmem [thread:$0]  %s17, 192, %s19, [#allocation3], 64, 64, 4
    $region9: #{tpu_custom_call.1} parent=1 // pred_fallthru
      _
    // Predicated region
    $region10: #{tpu_custom_call.1} parent=1 // pred_check
      _
    $region11: #{tpu_custom_call.1} parent=1 // pred_check_branch
      %26 = sbr.rel (0) target = $region13
    $region12: #{tpu_custom_call.1} parent=1 // pred_region
      _
    $region13: #{tpu_custom_call.1} parent=1 // pred_fallthru
      _
    // Predicated region
    $region14: #{tpu_custom_call.1} parent=1 // pred_check
      _
    $region15: #{tpu_custom_call.1} parent=1 // pred_check_branch
      %28 = sbr.rel (0) target = $region17
    $region16: #{tpu_custom_call.1} parent=1 // pred_region
      %30 = dma.done [#allocation3], 192
    $region17: #{tpu_custom_call.1} parent=1 // pred_fallthru
      _
    %v32 = vld [vmem:[#allocation2] sm:$0xf]
    %v33 = vld [vmem:[#allocation2 + $0x4] sm:$0xf]
    %v34 = vld [vmem:[#allocation2 + $0x8] sm:$0xf]
    %v35 = vld [vmem:[%s0] sm:$0xf]
    %v36 = vld [vmem:[%s0 + $0x4] sm:$0xf]
    %v37 = vld [vmem:[%s0 + $0x8] sm:$0xf]
    %v38 = vld [vmem:[%s0 + $0xc] sm:$0xf]
    %v42 = vunpack.c.l.b16 %v32
    %v43 = vunpack.c.l.b16 %v33
    %v44 = vunpack.c.l.b16 %v34
    %v45 = vpack.c.b16 %v43, %v42
    %v46 = vpack.c.b16 %v44, %v44
    %v51 = vunpack.c.l.b16 %v35
    %v52 = vunpack.c.l.b16 %v36
    %v53 = vunpack.c.l.b16 %v37
    %v54 = vunpack.c.l.b16 %v38
    %v55 = vpack.c.b16 %v52, %v51
    %v56 = vpack.c.b16 %v54, %v53
    %vm59 = vcmask 261120
    %v61 = vsel %vm59, %v45, 0
    %v64 = vsel %vm59, %v46, 0
    %66 = vmatpush.bf16.msra.mxu0 0
    %67 = vmatpush.bf16.msra.mxu0 0
    %68 = vmatpush.bf16.msra.mxu0 0
    %69 = vmatpush.bf16.msra.mxu0 0
    %70 = vmatpush.bf16.msra.mxu0 0
    %71 = vmatpush.bf16.msra.mxu0 0
    %72 = vmatpush.bf16.msra.mxu0 %v56
    %73 = vmatpush.bf16.msra.mxu0 %v55
    %74 = vmatmul.bf16.gmra.mxu0 %v61
    %v75 = vpop.f32.mrf.mxu0
    %v76 = vadd.f32 0.0, %v75
    %v77 = vpop.f32.mrf.mxu0
    %v78 = vadd.f32 0.0, %v77
    %79 = vmatmul.bf16.gmra.mxu0 %v64
    %v80 = vpop.f32.mrf.mxu0
    %v81 = vadd.f32 0.0, %v80
    %v82 = vpop.f32.mrf.mxu0
    %83 = vdwg.mxu0
    %84 = vadd.xlane.f32.xlu0 %v76
    %v85 = vpop.xlane.xlu0 %84
    %86 = vadd.xlane.f32.xlu0 %v78
    %v87 = vpop.xlane.xlu0 %86
    %88 = vadd.xlane.f32.xlu0 %v81
    %v89 = vpop.xlane.xlu0 %88
    %v90 = vmul.f32 %v85, 0.03125
    %v91 = vmul.f32 %v87, 0.03125
    %v92 = vmul.f32 %v89, 0.03125
    %v93 = vlaneseq
    %v94 = vand.u32 %v93, 127
    %vm95 = vcmp.lt.s32.totalorder %v94, 32
    %v96 = vsel %vm95, 1, 0
    %v97 = vcvt.s32.f32 %v96
    %v98 = vsub.f32 %v76, %v90
    %v99 = vsub.f32 %v78, %v91
    %v100 = vsub.f32 %v81, %v92
    %v101 = vmul.f32 %v98, %v97
    %v102 = vmul.f32 %v99, %v97
    %v103 = vmul.f32 %v100, %v97
    %v104 = vmul.f32 %v101, %v101
    %v105 = vmul.f32 %v102, %v102
    %v106 = vmul.f32 %v103, %v103
    %107 = vadd.xlane.f32.xlu0 %v104
    %v108 = vpop.xlane.xlu0 %107
    %109 = vadd.xlane.f32.xlu0 %v105
    %v110 = vpop.xlane.xlu0 %109
    %111 = vadd.xlane.f32.xlu0 %v106
    %v112 = vpop.xlane.xlu0 %111
    %v113 = vmul.f32 %v108, 0.03125
    %v114 = vmul.f32 %v110, 0.03125
    %v115 = vmul.f32 %v112, 0.03125
    %v116 = vld [vmem:[%s2] sm:$0xff]
    %v117 = vld [vmem:[%s2 + $0x8] sm:$0xff]
    %v118 = vld [vmem:[%s2 + $0x10] sm:$0xff]
    %v119 = vadd.f32 %v113, 1e-05
    %v120 = vadd.f32 %v114, 1e-05
    %v121 = vadd.f32 %v115, 1e-05
    %v122 = vrsqrt.pop %v119
    %v123 = vmul.f32 %v122, %v119
    %v124 = vmul.f32 %v123, %v122
    %v125 = vmul.f32 0.5, %v124
    %v126 = vsub.f32 1.5, %v125
    %v127 = vmul.f32 %v122, %v126
    %vm128 = vweird.f32 %v119
    %vm129 = vweird.f32 %v122
    %vm130 = vmor %vm128, %vm129
    %v131 = vsel %vm130, %v122, %v127
    %v132 = vrsqrt.pop %v120
    %v133 = vmul.f32 %v132, %v120
    %v134 = vmul.f32 %v133, %v132
    %v135 = vmul.f32 0.5, %v134
    %v136 = vsub.f32 1.5, %v135
    %v137 = vmul.f32 %v132, %v136
    %vm138 = vweird.f32 %v120
    %vm139 = vweird.f32 %v132
    %vm140 = vmor %vm138, %vm139
    %v141 = vsel %vm140, %v132, %v137
    %v142 = vrsqrt.pop %v121
    %v143 = vmul.f32 %v142, %v121
    %v144 = vmul.f32 %v143, %v142
    %v145 = vmul.f32 0.5, %v144
    %v146 = vsub.f32 1.5, %v145
    %v147 = vmul.f32 %v142, %v146
    %vm148 = vweird.f32 %v121
    %vm149 = vweird.f32 %v142
    %vm150 = vmor %vm148, %vm149
    %v151 = vsel %vm150, %v142, %v147
    %v152 = vmul.f32 %v116, %v131
    %v153 = vmul.f32 %v117, %v141
    %v154 = vmul.f32 %v118, %v151
    %v155 = vmul.f32 %v90, %v152
    %v156 = vmul.f32 %v91, %v153
    %v157 = vmul.f32 %v92, %v154
    %161 = vrot.lane.b32.xlu0 %v155, 1
    %v162 = vpop.permute.xlu0 %161
    %163 = vrot.lane.b32.xlu0 %v156, 1
    %v164 = vpop.permute.xlu0 %163
    %165 = vrot.lane.b32.xlu0 %v157, 1
    %v166 = vpop.permute.xlu0 %165
    %v170 = vsub.f32 %v116, %v162
    %v171 = vsub.f32 %v117, %v164
    %v172 = vsub.f32 %v118, %v166
    %174 = vset.pattern.permute.xlu0 0
    %175 = vperm.xlu0 %174, %v152
    %v176 = vpop.permute.xlu0 %175
    %179 = vset.pattern.permute.xlu0 0
    %180 = vperm.xlu0 %179, %v153
    %v181 = vpop.permute.xlu0 %180
    %184 = vset.pattern.permute.xlu0 0
    %185 = vperm.xlu0 %184, %v154
    %v186 = vpop.permute.xlu0 %185
    %v188 = vmul.f32 %v76, %v176
    %v189 = vmul.f32 %v78, %v181
    %v190 = vmul.f32 %v81, %v186
    %192 = vset.pattern.permute.xlu0 1
    %193 = vperm.xlu0 %192, %v170
    %v194 = vpop.permute.xlu0 %193
    %197 = vset.pattern.permute.xlu0 1
    %198 = vperm.xlu0 %197, %v171
    %v199 = vpop.permute.xlu0 %198
    %202 = vset.pattern.permute.xlu0 1
    %203 = vperm.xlu0 %202, %v172
    %v204 = vpop.permute.xlu0 %203
    %v206 = vadd.f32 %v188, %v194
    %v207 = vadd.f32 %v189, %v199
    %v208 = vadd.f32 %v190, %v204
    %v209 = vmax.f32 %v206, 0.0
    %v210 = vmax.f32 %v207, 0.0
    %v211 = vmax.f32 %v208, 0.0
    %212 = vst [vmem:[#allocation5] sm:$0xff] %v209
    %213 = vst [vmem:[#allocation5 + $0x8] sm:$0xff] %v210
    %214 = vst [vmem:[#allocation5 + $0x10] sm:$0xff] %v211
    // Predicated region
    $region18: #{tpu_custom_call.1} parent=1 // pred_check
      _
    $region19: #{tpu_custom_call.1} parent=1 // pred_check_branch
      %216 = sbr.rel (0) target = $region21
    $region20: #{tpu_custom_call.1} parent=1 // pred_region
      %218 = vsyncadd [#allocation4], 0
      %s219 = sshll.u32 [#allocation5], 4
      %s220 = int_to_ptr.vmem [resolvable:$true] %s219
      %s221 = sshll.u32 %s3, 4
      %s222 = int_to_ptr.hbm [resolvable:$true] %s221
      %227 = dma.vmem_to_hbm [thread:$0]  %s220, 384, %s222, [#allocation4], 128, 128, 8
    $region21: #{tpu_custom_call.1} parent=1 // pred_fallthru
      _
    // Predicated region
    $region22: #{tpu_custom_call.1} parent=1 // pred_check
      _
    $region23: #{tpu_custom_call.1} parent=1 // pred_check_branch
      %229 = sbr.rel (0) target = $region25
    $region24: #{tpu_custom_call.1} parent=1 // pred_region
      %231 = dma.done [#allocation4], 384
    $region25: #{tpu_custom_call.1} parent=1 // pred_fallthru
      _
    %232 = vsyncpa [#allocation3], 1
    %233 = vsyncpa [#allocation4], 1

</llo_original>
